<compile_context>
chip_gen: v7x
topology: tpu7x:2x2x1
jax: 0.10.0
libtpu: 0.0.40
codegen_flags: <defaults>
</compile_context>

<pallas_src>
import functools

import jax
import jax.numpy as jnp
from jax import lax
from jax.experimental import pallas as pl
from jax.experimental.pallas import tpu as pltpu

BN_EPS = 1e-5
LANE = 128  # every feature axis is zero-padded to one full vreg lane width


def _full_spec(shape):
    # Whole array resident in VMEM; grid=() -> index_map takes no args.
    return pl.BlockSpec(shape, lambda: (0,) * len(shape))


def _autoencoder_kernel(x_ref, w_ref, v_ref, x_hat_ref, latent_ref, *, layer_cfgs):
    """Entire Autoencoder forward in a single fused kernel.

    x_ref:      f32 [num, LANE]             (lane-padded input)
    w_ref:      f32 [n_layers, LANE, LANE]  (stacked, pre-transposed weights)
    v_ref:      f32 [3*n_layers, LANE]      (rows 3l/3l+1/3l+2 = bias/gamma/beta)
    x_hat_ref:  f32 [num, LANE]             (lane-padded reconstruction)
    latent_ref: f32 [num, LANE]             (lane-padded softmax latent)

    layer_cfgs: static tuple of (use_bn, act, out_true) per layer.  Padded
    weight rows/cols and padded bias/gamma/beta entries are zero, so padded
    activation columns stay exactly zero through Linear/BN/ReLU; the softmax
    is explicitly masked to its true columns.
    """
    h = x_ref[...]  # f32 [num, LANE]
    for li, (use_bn, act, out_true) in enumerate(layer_cfgs):
        w = w_ref[li]                          # f32 [LANE, LANE]
        b = v_ref[pl.ds(3 * li, 1), :]         # f32 [1, LANE]

        # f32 MXU operands, f32 accumulation (parity with the f32 reference).
        y = jnp.dot(h, w, preferred_element_type=jnp.float32) + b

        if use_bn:
            gamma = v_ref[pl.ds(3 * li + 1, 1), :]   # [1, LANE]
            beta = v_ref[pl.ds(3 * li + 2, 1), :]    # [1, LANE]
            # nn.BatchNorm1d (training mode): batch mean, biased batch variance.
            mean = jnp.mean(y, axis=0, keepdims=True)
            centered = y - mean
            var = jnp.mean(centered * centered, axis=0, keepdims=True)
            y = centered * lax.rsqrt(var + BN_EPS) * gamma + beta

        if act == "relu":
            y = jnp.maximum(y, 0.0)
        elif act == "softmax":
            # Masked softmax over the true `out_true` columns.
            col = lax.broadcasted_iota(jnp.int32, y.shape, 1)
            valid = col < out_true
            y_m = jnp.where(valid, y, jnp.float32(-1e30))
            m = jnp.max(y_m, axis=1, keepdims=True)
            e = jnp.exp(y_m - m)                 # padded cols -> exactly 0
            denom = jnp.sum(e, axis=1, keepdims=True)
            y = e / denom                        # exact divide (rows sum to 1)
            latent_ref[...] = y.astype(latent_ref.dtype)

        h = y

    x_hat_ref[...] = h.astype(x_hat_ref.dtype)


class AutoencoderPallas:
    """JAX/Pallas port of the PyTorch Autoencoder (activation='relu', batchnorm=True)."""

    def __init__(self, encoder_dim, key):
        self._dim = len(encoder_dim) - 1
        self.feat_dim = encoder_dim[0]
        self.latent_dim = encoder_dim[-1]
        decoder_dim = list(reversed(encoder_dim))

        # (in_true, out_true, use_bn, act) per layer, in forward order.
        layer_specs = []
        for i in range(self._dim):
            if i < self._dim - 1:
                layer_specs.append((encoder_dim[i], encoder_dim[i + 1], True, "relu"))
            else:
                layer_specs.append((encoder_dim[i], encoder_dim[i + 1], False, "softmax"))
        for i in range(self._dim):
            layer_specs.append((decoder_dim[i], decoder_dim[i + 1], True, "relu"))

        n_layers = len(layer_specs)
        self.n_layers = n_layers
        keys = jax.random.split(key, n_layers)

        # Packed, padded parameter buffers (2 kernel inputs total).
        w_stack = jnp.zeros((n_layers, LANE, LANE), jnp.float32)
        v_stack = jnp.zeros((3 * n_layers, LANE), jnp.float32)

        self.ref_layers = []   # unpadded params for the pure-JAX reference
        cfgs = []
        for li, (in_t, out_t, use_bn, act) in enumerate(layer_specs):
            kw, kb = jax.random.split(keys[li])
            bound = 1.0 / (in_t ** 0.5)
            w = jax.random.uniform(kw, (in_t, out_t), jnp.float32, -bound, bound)
            b = jax.random.uniform(kb, (out_t,), jnp.float32, -bound, bound)
            w_stack = w_stack.at[li, :in_t, :out_t].set(w)
            v_stack = v_stack.at[3 * li, :out_t].set(b)          # bias
            if use_bn:
                v_stack = v_stack.at[3 * li + 1, :out_t].set(1.0)  # gamma
                # beta row stays zero
            self.ref_layers.append((w, b, use_bn, act))
            cfgs.append((use_bn, act, out_t))

        self.w_stack = w_stack
        self.v_stack = v_stack
        self.layer_cfgs = tuple(cfgs)

    def __call__(self, x):
        num, feat = x.shape
        assert feat == self.feat_dim
        # Grid-less design keeps the whole batch resident in VMEM (~1.5 KiB of
        # live f32 activations per row).  Cap so the limit is loud, not a
        # silent OOM on v7x's 64 MiB VMEM.
        # TODO(synk): batch-tiled grid + two-pass BN reduction for larger num.
        assert num <= 4096, "batch too large for the whole-batch-resident kernel"

        # Lane-pad x to 128 so layer 0 is a full-vreg load and all matmuls are
        # uniform K=128 MXU tiles.
        x_p = jnp.pad(x, ((0, 0), (0, LANE - feat)))

        kernel = functools.partial(_autoencoder_kernel, layer_cfgs=self.layer_cfgs)

        # Scheduling hint for XLA (free).
        flops = 2 * num * LANE * LANE * self.n_layers + 12 * num * LANE * self.n_layers
        transcendentals = num * LANE + self.n_layers * LANE   # softmax exp + BN rsqrt
        bytes_accessed = 4 * (x_p.size + self.w_stack.size + self.v_stack.size
                              + 2 * num * LANE)
        cost = pl.CostEstimate(flops=int(flops),
                               transcendentals=int(transcendentals),
                               bytes_accessed=int(bytes_accessed))

        out_shape = (
            jax.ShapeDtypeStruct((num, LANE), jnp.float32),  # x_hat (lane-padded)
            jax.ShapeDtypeStruct((num, LANE), jnp.float32),  # latent (lane-padded)
        )
        x_hat_p, latent_p = pl.pallas_call(
            kernel,
            out_shape=out_shape,
            in_specs=[_full_spec(x_p.shape),
                      _full_spec(self.w_stack.shape),
                      _full_spec(self.v_stack.shape)],
            out_specs=(_full_spec((num, LANE)), _full_spec((num, LANE))),
            cost_estimate=cost,
        )(x_p, self.w_stack, self.v_stack)

        # Strip lane padding outside the kernel (tiny XLA slices).
        return x_hat_p[:, :self.feat_dim], latent_p[:, :self.latent_dim]


def _reference_forward(x, layers):
    """Pure-JAX reference of the PyTorch forward (training-mode BN, gamma=1, beta=0)."""
    h = x
    latent = None
    for (w, b, use_bn, act) in layers:
        y = h @ w + b
        if use_bn:
            mean = jnp.mean(y, axis=0, keepdims=True)
            var = jnp.mean((y - mean) ** 2, axis=0, keepdims=True)
            y = (y - mean) / jnp.sqrt(var + BN_EPS)
        if act == "relu":
            y = jnp.maximum(y, 0.0)
        else:  # softmax (final encoder layer)
            y = jax.nn.softmax(y, axis=1)
            latent = y
        h = y
    return h, latent


if __name__ == "__main__":
    key = jax.random.PRNGKey(0)
    k_params, k_data = jax.random.split(key)

    # Small, forward-consistent shapes: x is [num, feat_dim].
    encoder_dim = [64, 32, 16]   # feat_dim=64, latent_dim=16
    num = 8

    model = AutoencoderPallas(encoder_dim, k_params)
    x = jax.random.normal(k_data, (num, encoder_dim[0]), dtype=jnp.float32)

    x_hat, latent = model(x)
    jax.block_until_ready(x_hat)
    jax.block_until_ready(latent)

    assert x_hat.shape == (num, encoder_dim[0])
    assert latent.shape == (num, encoder_dim[-1])
    assert bool(jnp.all(jnp.isfinite(x_hat))) and bool(jnp.all(jnp.isfinite(latent)))
    # Exact-divide softmax: rows sum to 1 to f32 accuracy.
    assert bool(jnp.allclose(jnp.sum(latent, axis=1), 1.0, atol=1e-4))
    # Decoder output is post-ReLU, hence non-negative.
    assert bool(jnp.all(x_hat >= 0.0))

    # Compare against a pure-JAX reference of the same forward.  Tolerances
    # allow for possible matmul-precision differences between the Mosaic MXU
    # lowering and XLA's dot on the reference path (amplified through BN).
    x_hat_ref, latent_ref = _reference_forward(x, model.ref_layers)
    assert float(jnp.max(jnp.abs(latent - latent_ref))) < 1e-2
    assert float(jnp.max(jnp.abs(x_hat - x_hat_ref))) < 1e-1

    print("KERNEL_OK")
</pallas_src>

<mosaic_0001>
module attributes {stable_mosaic.version = 11 : i64} {
  func.func @_autoencoder_kernel(%arg0: memref<8x128xf32, #tpu.memory_space<vmem>>, %arg1: memref<4x128x128xf32, #tpu.memory_space<vmem>>, %arg2: memref<12x128xf32, #tpu.memory_space<vmem>>, %arg3: memref<8x128xf32, #tpu.memory_space<vmem>>, %arg4: memref<8x128xf32, #tpu.memory_space<vmem>>) attributes {dimension_semantics = [], scalar_prefetch = 0 : i64, scratch_operands = 0 : i64, tpu.core_type = #tpu.core_type<tc>} {
    %c0 = arith.constant 0 : index
    %c0_0 = arith.constant 0 : index
    %0 = vector.load %arg0[%c0, %c0_0] : memref<8x128xf32, #tpu.memory_space<vmem>>, vector<8x128xf32>
    %c0_1 = arith.constant 0 : index
    %c0_2 = arith.constant 0 : index
    %c0_3 = arith.constant 0 : index
    %1 = vector.load %arg1[%c0_1, %c0_2, %c0_3] : memref<4x128x128xf32, #tpu.memory_space<vmem>>, vector<1x128x128xf32>
    %2 = vector.shape_cast %1 : vector<1x128x128xf32> to vector<128x128xf32>
    %c0_4 = arith.constant 0 : index
    %c0_5 = arith.constant 0 : index
    %3 = vector.load %arg2[%c0_4, %c0_5] : memref<12x128xf32, #tpu.memory_space<vmem>>, vector<1x128xf32>
    %cst = arith.constant dense<0.000000e+00> : vector<8x128xf32>
    %4 = tpu.matmul %0, %2, %cst {dimension_numbers = #tpu.dot_dimension_numbers<[1], [0], [0], [1], [0, 0, 1, 1], [], []>} : vector<8x128xf32>, vector<128x128xf32>, vector<8x128xf32> -> vector<8x128xf32>
    %5 = vector.broadcast %3 : vector<1x128xf32> to vector<8x128xf32>
    %6 = arith.addf %4, %5 : vector<8x128xf32>
    %c1 = arith.constant 1 : index
    %c0_6 = arith.constant 0 : index
    %7 = vector.load %arg2[%c1, %c0_6] : memref<12x128xf32, #tpu.memory_space<vmem>>, vector<1x128xf32>
    %c2 = arith.constant 2 : index
    %c0_7 = arith.constant 0 : index
    %8 = vector.load %arg2[%c2, %c0_7] : memref<12x128xf32, #tpu.memory_space<vmem>>, vector<1x128xf32>
    %cst_8 = arith.constant dense<0.000000e+00> : vector<128xf32>
    %9 = vector.multi_reduction <add>, %6, %cst_8 [0] : vector<8x128xf32> to vector<128xf32>
    %10 = vector.shape_cast %9 : vector<128xf32> to vector<1x128xf32>
    %cst_9 = arith.constant 8.000000e+00 : f32
    %11 = vector.broadcast %cst_9 : f32 to vector<1x128xf32>
    %12 = arith.divf %10, %11 : vector<1x128xf32>
    %13 = vector.broadcast %12 : vector<1x128xf32> to vector<8x128xf32>
    %14 = arith.subf %6, %13 : vector<8x128xf32>
    %15 = arith.mulf %14, %14 : vector<8x128xf32>
    %cst_10 = arith.constant dense<0.000000e+00> : vector<128xf32>
    %16 = vector.multi_reduction <add>, %15, %cst_10 [0] : vector<8x128xf32> to vector<128xf32>
    %17 = vector.shape_cast %16 : vector<128xf32> to vector<1x128xf32>
    %cst_11 = arith.constant 8.000000e+00 : f32
    %18 = vector.broadcast %cst_11 : f32 to vector<1x128xf32>
    %19 = arith.divf %17, %18 : vector<1x128xf32>
    %cst_12 = arith.constant 9.99999974E-6 : f32
    %20 = vector.broadcast %cst_12 : f32 to vector<1x128xf32>
    %21 = arith.addf %19, %20 : vector<1x128xf32>
    %22 = math.rsqrt %21 : vector<1x128xf32>
    %23 = vector.broadcast %22 : vector<1x128xf32> to vector<8x128xf32>
    %24 = arith.mulf %14, %23 : vector<8x128xf32>
    %25 = vector.broadcast %7 : vector<1x128xf32> to vector<8x128xf32>
    %26 = arith.mulf %24, %25 : vector<8x128xf32>
    %27 = vector.broadcast %8 : vector<1x128xf32> to vector<8x128xf32>
    %28 = arith.addf %26, %27 : vector<8x128xf32>
    %cst_13 = arith.constant 0.000000e+00 : f32
    %29 = vector.broadcast %cst_13 : f32 to vector<8x128xf32>
    %30 = arith.maximumf %28, %29 : vector<8x128xf32>
    %c1_14 = arith.constant 1 : index
    %c0_15 = arith.constant 0 : index
    %c0_16 = arith.constant 0 : index
    %31 = vector.load %arg1[%c1_14, %c0_15, %c0_16] : memref<4x128x128xf32, #tpu.memory_space<vmem>>, vector<1x128x128xf32>
    %32 = vector.shape_cast %31 : vector<1x128x128xf32> to vector<128x128xf32>
    %c3 = arith.constant 3 : index
    %c0_17 = arith.constant 0 : index
    %33 = vector.load %arg2[%c3, %c0_17] : memref<12x128xf32, #tpu.memory_space<vmem>>, vector<1x128xf32>
    %cst_18 = arith.constant dense<0.000000e+00> : vector<8x128xf32>
    %34 = tpu.matmul %30, %32, %cst_18 {dimension_numbers = #tpu.dot_dimension_numbers<[1], [0], [0], [1], [0, 0, 1, 1], [], []>} : vector<8x128xf32>, vector<128x128xf32>, vector<8x128xf32> -> vector<8x128xf32>
    %35 = vector.broadcast %33 : vector<1x128xf32> to vector<8x128xf32>
    %36 = arith.addf %34, %35 : vector<8x128xf32>
    %37 = tpu.iota {dimensions = array<i32: 1>} : vector<8x128xi32>
    %c16_i32 = arith.constant 16 : i32
    %38 = vector.broadcast %c16_i32 : i32 to vector<8x128xi32>
    %39 = arith.cmpi slt, %37, %38 : vector<8x128xi32>
    %cst_19 = arith.constant -1.000000e+30 : f32
    %40 = vector.broadcast %cst_19 : f32 to vector<8x128xf32>
    %41 = arith.select %39, %36, %40 : vector<8x128xi1>, vector<8x128xf32>
    %cst_20 = arith.constant dense<0xFF800000> : vector<8xf32>
    %42 = vector.multi_reduction <maximumf>, %41, %cst_20 [1] : vector<8x128xf32> to vector<8xf32>
    %43 = vector.shape_cast %42 : vector<8xf32> to vector<8x1xf32>
    %44 = vector.broadcast %43 : vector<8x1xf32> to vector<8x128xf32>
    %45 = arith.subf %41, %44 : vector<8x128xf32>
    %46 = math.exp %45 : vector<8x128xf32>
    %cst_21 = arith.constant dense<0.000000e+00> : vector<8xf32>
    %47 = vector.multi_reduction <add>, %46, %cst_21 [1] : vector<8x128xf32> to vector<8xf32>
    %48 = vector.shape_cast %47 : vector<8xf32> to vector<8x1xf32>
    %49 = vector.broadcast %48 : vector<8x1xf32> to vector<8x128xf32>
    %50 = arith.divf %46, %49 : vector<8x128xf32>
    %c0_22 = arith.constant 0 : index
    %c0_23 = arith.constant 0 : index
    %51 = vector.load %arg4[%c0_22, %c0_23] : memref<8x128xf32, #tpu.memory_space<vmem>>, vector<8x128xf32>
    tpu.vector_store %arg4[%c0_22, %c0_23], %50 {strides = array<i32>} : memref<8x128xf32, #tpu.memory_space<vmem>>, vector<8x128xf32>,
    %c2_24 = arith.constant 2 : index
    %c0_25 = arith.constant 0 : index
    %c0_26 = arith.constant 0 : index
    %52 = vector.load %arg1[%c2_24, %c0_25, %c0_26] : memref<4x128x128xf32, #tpu.memory_space<vmem>>, vector<1x128x128xf32>
    %53 = vector.shape_cast %52 : vector<1x128x128xf32> to vector<128x128xf32>
    %c6 = arith.constant 6 : index
    %c0_27 = arith.constant 0 : index
    %54 = vector.load %arg2[%c6, %c0_27] : memref<12x128xf32, #tpu.memory_space<vmem>>, vector<1x128xf32>
    %cst_28 = arith.constant dense<0.000000e+00> : vector<8x128xf32>
    %55 = tpu.matmul %50, %53, %cst_28 {dimension_numbers = #tpu.dot_dimension_numbers<[1], [0], [0], [1], [0, 0, 1, 1], [], []>} : vector<8x128xf32>, vector<128x128xf32>, vector<8x128xf32> -> vector<8x128xf32>
    %56 = vector.broadcast %54 : vector<1x128xf32> to vector<8x128xf32>
    %57 = arith.addf %55, %56 : vector<8x128xf32>
    %c7 = arith.constant 7 : index
    %c0_29 = arith.constant 0 : index
    %58 = vector.load %arg2[%c7, %c0_29] : memref<12x128xf32, #tpu.memory_space<vmem>>, vector<1x128xf32>
    %c8 = arith.constant 8 : index
    %c0_30 = arith.constant 0 : index
    %59 = vector.load %arg2[%c8, %c0_30] : memref<12x128xf32, #tpu.memory_space<vmem>>, vector<1x128xf32>
    %cst_31 = arith.constant dense<0.000000e+00> : vector<128xf32>
    %60 = vector.multi_reduction <add>, %57, %cst_31 [0] : vector<8x128xf32> to vector<128xf32>
    %61 = vector.shape_cast %60 : vector<128xf32> to vector<1x128xf32>
    %cst_32 = arith.constant 8.000000e+00 : f32
    %62 = vector.broadcast %cst_32 : f32 to vector<1x128xf32>
    %63 = arith.divf %61, %62 : vector<1x128xf32>
    %64 = vector.broadcast %63 : vector<1x128xf32> to vector<8x128xf32>
    %65 = arith.subf %57, %64 : vector<8x128xf32>
    %66 = arith.mulf %65, %65 : vector<8x128xf32>
    %cst_33 = arith.constant dense<0.000000e+00> : vector<128xf32>
    %67 = vector.multi_reduction <add>, %66, %cst_33 [0] : vector<8x128xf32> to vector<128xf32>
    %68 = vector.shape_cast %67 : vector<128xf32> to vector<1x128xf32>
    %cst_34 = arith.constant 8.000000e+00 : f32
    %69 = vector.broadcast %cst_34 : f32 to vector<1x128xf32>
    %70 = arith.divf %68, %69 : vector<1x128xf32>
    %cst_35 = arith.constant 9.99999974E-6 : f32
    %71 = vector.broadcast %cst_35 : f32 to vector<1x128xf32>
    %72 = arith.addf %70, %71 : vector<1x128xf32>
    %73 = math.rsqrt %72 : vector<1x128xf32>
    %74 = vector.broadcast %73 : vector<1x128xf32> to vector<8x128xf32>
    %75 = arith.mulf %65, %74 : vector<8x128xf32>
    %76 = vector.broadcast %58 : vector<1x128xf32> to vector<8x128xf32>
    %77 = arith.mulf %75, %76 : vector<8x128xf32>
    %78 = vector.broadcast %59 : vector<1x128xf32> to vector<8x128xf32>
    %79 = arith.addf %77, %78 : vector<8x128xf32>
    %cst_36 = arith.constant 0.000000e+00 : f32
    %80 = vector.broadcast %cst_36 : f32 to vector<8x128xf32>
    %81 = arith.maximumf %79, %80 : vector<8x128xf32>
    %c3_37 = arith.constant 3 : index
    %c0_38 = arith.constant 0 : index
    %c0_39 = arith.constant 0 : index
    %82 = vector.load %arg1[%c3_37, %c0_38, %c0_39] : memref<4x128x128xf32, #tpu.memory_space<vmem>>, vector<1x128x128xf32>
    %83 = vector.shape_cast %82 : vector<1x128x128xf32> to vector<128x128xf32>
    %c9 = arith.constant 9 : index
    %c0_40 = arith.constant 0 : index
    %84 = vector.load %arg2[%c9, %c0_40] : memref<12x128xf32, #tpu.memory_space<vmem>>, vector<1x128xf32>
    %cst_41 = arith.constant dense<0.000000e+00> : vector<8x128xf32>
    %85 = tpu.matmul %81, %83, %cst_41 {dimension_numbers = #tpu.dot_dimension_numbers<[1], [0], [0], [1], [0, 0, 1, 1], [], []>} : vector<8x128xf32>, vector<128x128xf32>, vector<8x128xf32> -> vector<8x128xf32>
    %86 = vector.broadcast %84 : vector<1x128xf32> to vector<8x128xf32>
    %87 = arith.addf %85, %86 : vector<8x128xf32>
    %c10 = arith.constant 10 : index
    %c0_42 = arith.constant 0 : index
    %88 = vector.load %arg2[%c10, %c0_42] : memref<12x128xf32, #tpu.memory_space<vmem>>, vector<1x128xf32>
    %c11 = arith.constant 11 : index
    %c0_43 = arith.constant 0 : index
    %89 = vector.load %arg2[%c11, %c0_43] : memref<12x128xf32, #tpu.memory_space<vmem>>, vector<1x128xf32>
    %cst_44 = arith.constant dense<0.000000e+00> : vector<128xf32>
    %90 = vector.multi_reduction <add>, %87, %cst_44 [0] : vector<8x128xf32> to vector<128xf32>
    %91 = vector.shape_cast %90 : vector<128xf32> to vector<1x128xf32>
    %cst_45 = arith.constant 8.000000e+00 : f32
    %92 = vector.broadcast %cst_45 : f32 to vector<1x128xf32>
    %93 = arith.divf %91, %92 : vector<1x128xf32>
    %94 = vector.broadcast %93 : vector<1x128xf32> to vector<8x128xf32>
    %95 = arith.subf %87, %94 : vector<8x128xf32>
    %96 = arith.mulf %95, %95 : vector<8x128xf32>
    %cst_46 = arith.constant dense<0.000000e+00> : vector<128xf32>
    %97 = vector.multi_reduction <add>, %96, %cst_46 [0] : vector<8x128xf32> to vector<128xf32>
    %98 = vector.shape_cast %97 : vector<128xf32> to vector<1x128xf32>
    %cst_47 = arith.constant 8.000000e+00 : f32
    %99 = vector.broadcast %cst_47 : f32 to vector<1x128xf32>
    %100 = arith.divf %98, %99 : vector<1x128xf32>
    %cst_48 = arith.constant 9.99999974E-6 : f32
    %101 = vector.broadcast %cst_48 : f32 to vector<1x128xf32>
    %102 = arith.addf %100, %101 : vector<1x128xf32>
    %103 = math.rsqrt %102 : vector<1x128xf32>
    %104 = vector.broadcast %103 : vector<1x128xf32> to vector<8x128xf32>
    %105 = arith.mulf %95, %104 : vector<8x128xf32>
    %106 = vector.broadcast %88 : vector<1x128xf32> to vector<8x128xf32>
    %107 = arith.mulf %105, %106 : vector<8x128xf32>
    %108 = vector.broadcast %89 : vector<1x128xf32> to vector<8x128xf32>
    %109 = arith.addf %107, %108 : vector<8x128xf32>
    %cst_49 = arith.constant 0.000000e+00 : f32
    %110 = vector.broadcast %cst_49 : f32 to vector<8x128xf32>
    %111 = arith.maximumf %109, %110 : vector<8x128xf32>
    %c0_50 = arith.constant 0 : index
    %c0_51 = arith.constant 0 : index
    %112 = vector.load %arg3[%c0_50, %c0_51] : memref<8x128xf32, #tpu.memory_space<vmem>>, vector<8x128xf32>
    tpu.vector_store %arg3[%c0_50, %c0_51], %111 {strides = array<i32>} : memref<8x128xf32, #tpu.memory_space<vmem>>, vector<8x128xf32>,
    return
  }
}

</mosaic_0001>

<llo_original>
// kernel: tpu_custom_call.1
$region0: #{tpu_custom_call.1}
  #allocation0 [shape = 'u32[]', space=smem, size = 0x4, offset = 0x4, fixed_abs, tag = 'smem constant byte address 0x4 - core index']
  #allocation1 [shape = 'u32[144,128]{1,0:T(1,128)}', space=vmem, size = 0x12000, scoped, tag = 'internal scratch']
  %s0 = inlined_call_operand.hbm [shape: f32[8,128], index: 0, kind: input, shape index: {}]
  %s1 = inlined_call_operand.hbm [shape: f32[4,128,128], index: 1, kind: input, shape index: {}]
  %s2 = inlined_call_operand.hbm [shape: f32[12,128], index: 2, kind: input, shape index: {}]
  %s3 = inlined_call_operand.hbm [shape: f32[8,128], index: 3, kind: output, shape index: {0}]
  %s4 = inlined_call_operand.hbm [shape: f32[8,128], index: 4, kind: output, shape index: {1}]
  %5 = xla_tuple %s3, %s4
  %s6 = sld [smem:[#allocation0]]
  $region42: #{tpu_custom_call.1} parent=0
    _
  %s8 = ssub.s32 1, %s6
  %s9 = scalar_select 0, %s8, %s6
  $region1: #{tpu_custom_call.1} parent=0
    #allocation2 [shape = 'u8[4096]{0}', space=vmem, size = 0x1000, scoped, tag = 'input window, operand 0, single buffered']
    #allocation3 [shape = 's32[1]{0}', space=sflag, size = 0x4, scoped, tag = 'scoped memory for tpu_custom_call.1']
    #allocation4 [shape = 's32[1]{0}', space=sflag, size = 0x4, scoped, tag = 'scoped memory for tpu_custom_call.1']
    #allocation5 [shape = 'u8[262144]{0}', space=vmem, size = 0x40000, scoped, tag = 'input window, operand 1, single buffered']
    #allocation6 [shape = 's32[1]{0}', space=sflag, size = 0x4, scoped, tag = 'scoped memory for tpu_custom_call.1']
    #allocation7 [shape = 'u8[8192]{0}', space=vmem, size = 0x2000, scoped, tag = 'input window, operand 2, single buffered']
    #allocation8 [shape = 'u8[4096]{0}', space=vmem, size = 0x1000, scoped, tag = 'output window, operand 0, single buffered']
    #allocation9 [shape = 'u8[4096]{0}', space=vmem, size = 0x1000, scoped, tag = 'output window, operand 1, single buffered']
    #allocation10 [shape = 's32[1]{0}', space=sflag, size = 0x4, scoped, tag = 'scoped memory for tpu_custom_call.1']
    %10 = vsyncpa [#allocation3], 0
    %11 = vsyncpa [#allocation6], 0
    %12 = vsyncpa [#allocation4], 0
    %13 = vsyncpa [#allocation10], 0
    // Predicated region
    $region2: #{tpu_custom_call.1} parent=1 // pred_check
      _
    $region3: #{tpu_custom_call.1} parent=1 // pred_check_branch
      %15 = sbr.rel (0) target = $region5
    $region4: #{tpu_custom_call.1} parent=1 // pred_region
      %s17 = ssub.s32 128, 128
      %18 = vsyncadd [#allocation3], %s17
      %s20 = sshll.u32 [#allocation2], 4
      %s21 = int_to_ptr.vmem [resolvable:$true] %s20
      %23 = dma.hbm_to_vmem [thread:$0]  %s0, 128, %s21, [#allocation3]
    $region5: #{tpu_custom_call.1} parent=1 // pred_fallthru
      _
    // Predicated region
    $region6: #{tpu_custom_call.1} parent=1 // pred_check
      _
    $region7: #{tpu_custom_call.1} parent=1 // pred_check_branch
      %25 = sbr.rel (0) target = $region9
    $region8: #{tpu_custom_call.1} parent=1 // pred_region
      %s27 = ssub.s32 8192, 8192
      %28 = vsyncadd [#allocation6], %s27
      %s29 = sshll.u32 [#allocation5], 4
      %s30 = int_to_ptr.vmem [resolvable:$true] %s29
      %35 = dma.hbm_to_vmem [thread:$0]  %s1, 8192, %s30, [#allocation6], 128, 128, 8
    $region9: #{tpu_custom_call.1} parent=1 // pred_fallthru
      _
    // Predicated region
    $region10: #{tpu_custom_call.1} parent=1 // pred_check
      _
    $region11: #{tpu_custom_call.1} parent=1 // pred_check_branch
      %37 = sbr.rel (0) target = $region13
    $region12: #{tpu_custom_call.1} parent=1 // pred_region
      %s39 = ssub.s32 256, 256
      %40 = vsyncadd [#allocation6], %s39
      %s41 = sshll.u32 [#allocation7], 4
      %s42 = int_to_ptr.vmem [resolvable:$true] %s41
      %47 = dma.hbm_to_vmem [thread:$0]  %s2, 256, %s42, [#allocation6], 128, 128, 8
    $region13: #{tpu_custom_call.1} parent=1 // pred_fallthru
      _
    // Predicated region
    $region14: #{tpu_custom_call.1} parent=1 // pred_check
      _
    $region15: #{tpu_custom_call.1} parent=1 // pred_check_branch
      %49 = sbr.rel (0) target = $region17
    $region16: #{tpu_custom_call.1} parent=1 // pred_region
      %50 = dma.done [#allocation3], 128
    $region17: #{tpu_custom_call.1} parent=1 // pred_fallthru
      _
    // Predicated region
    $region18: #{tpu_custom_call.1} parent=1 // pred_check
      _
    $region19: #{tpu_custom_call.1} parent=1 // pred_check_branch
      %52 = sbr.rel (0) target = $region21
    $region20: #{tpu_custom_call.1} parent=1 // pred_region
      %53 = dma.done [#allocation6], 8192
    $region21: #{tpu_custom_call.1} parent=1 // pred_fallthru
      _
    // Predicated region
    $region22: #{tpu_custom_call.1} parent=1 // pred_check
      _
    $region23: #{tpu_custom_call.1} parent=1 // pred_check_branch
      %55 = sbr.rel (0) target = $region25
    $region24: #{tpu_custom_call.1} parent=1 // pred_region
      %56 = dma.done [#allocation6], 256
    $region25: #{tpu_custom_call.1} parent=1 // pred_fallthru
      _
    %v57 = vld [vmem:[#allocation2] sm:$0xff]
    %v58 = vld [vmem:[#allocation5] sm:$0xff]
    %v59 = vld [vmem:[#allocation5 + $0x8] sm:$0xff]
    %v60 = vld [vmem:[#allocation5 + $0x10] sm:$0xff]
    %v61 = vld [vmem:[#allocation5 + $0x18] sm:$0xff]
    %v62 = vld [vmem:[#allocation5 + $0x20] sm:$0xff]
    %v63 = vld [vmem:[#allocation5 + $0x28] sm:$0xff]
    %v64 = vld [vmem:[#allocation5 + $0x30] sm:$0xff]
    %v65 = vld [vmem:[#allocation5 + $0x38] sm:$0xff]
    %v66 = vld [vmem:[#allocation5 + $0x40] sm:$0xff]
    %v67 = vld [vmem:[#allocation5 + $0x48] sm:$0xff]
    %v68 = vld [vmem:[#allocation5 + $0x50] sm:$0xff]
    %v69 = vld [vmem:[#allocation5 + $0x58] sm:$0xff]
    %v70 = vld [vmem:[#allocation5 + $0x60] sm:$0xff]
    %v71 = vld [vmem:[#allocation5 + $0x68] sm:$0xff]
    %v72 = vld [vmem:[#allocation5 + $0x70] sm:$0xff]
    %v73 = vld [vmem:[#allocation5 + $0x78] sm:$0xff]
    %v74 = vld [vmem:[#allocation7] sm:$0x1]
    %v75 = vlaneseq
    %v76 = vshrl.u32 %v75, 7
    %v77 = vsub.s32 0, %v76
    %v78 = vrot.slane %v74, %v77
    %79 = vmatprep.subr.mxu0 0.0
    %80 = vmatpush1.msra.mxu0 %v58
    %81 = vmatprep.subr.mxu0 0.0
    %82 = vmatpush1.msra.mxu0 %v59
    %83 = vmatprep.subr.mxu0 0.0
    %84 = vmatpush1.msra.mxu0 %v60
    %85 = vmatprep.subr.mxu0 0.0
    %86 = vmatpush1.msra.mxu0 %v61
    %87 = vmatprep.subr.mxu0 0.0
    %88 = vmatpush1.msra.mxu0 %v62
    %89 = vmatprep.subr.mxu0 0.0
    %90 = vmatpush1.msra.mxu0 %v63
    %91 = vmatprep.subr.mxu0 0.0
    %92 = vmatpush1.msra.mxu0 %v64
    %93 = vmatprep.subr.mxu0 0.0
    %94 = vmatpush1.msra.mxu0 %v65
    %95 = vmatprep.subr.mxu0 0.0
    %96 = vmatpush1.msra.mxu0 %v66
    %97 = vmatprep.subr.mxu0 0.0
    %98 = vmatpush1.msra.mxu0 %v67
    %99 = vmatprep.subr.mxu0 0.0
    %100 = vmatpush1.msra.mxu0 %v68
    %101 = vmatprep.subr.mxu0 0.0
    %102 = vmatpush1.msra.mxu0 %v69
    %103 = vmatprep.subr.mxu0 0.0
    %104 = vmatpush1.msra.mxu0 %v70
    %105 = vmatprep.subr.mxu0 0.0
    %106 = vmatpush1.msra.mxu0 %v71
    %107 = vmatprep.subr.mxu0 0.0
    %108 = vmatpush1.msra.mxu0 %v72
    %109 = vmatprep.subr.mxu0 0.0
    %110 = vmatpush1.msra.mxu0 %v73
    %111 = vmatprep.subr.mxu0 0.0
    %112 = vmatpush1.msra.mxu0 0.0
    %113 = vmatprep.subr.mxu0 0.0
    %114 = vmatpush1.msra.mxu0 0.0
    %115 = vmatprep.subr.mxu0 0.0
    %116 = vmatpush1.msra.mxu0 0.0
    %117 = vmatprep.subr.mxu0 0.0
    %118 = vmatpush1.msra.mxu0 0.0
    %119 = vmatprep.subr.mxu0 0.0
    %120 = vmatpush1.msra.mxu0 0.0
    %121 = vmatprep.subr.mxu0 0.0
    %122 = vmatpush1.msra.mxu0 0.0
    %123 = vmatprep.subr.mxu0 0.0
    %124 = vmatpush1.msra.mxu0 0.0
    %125 = vmatprep.subr.mxu0 0.0
    %126 = vmatpush1.msra.mxu0 0.0
    %127 = vmatprep.subr.mxu0 0.0
    %128 = vmatpush1.msra.mxu0 0.0
    %129 = vmatprep.subr.mxu0 0.0
    %130 = vmatpush1.msra.mxu0 0.0
    %131 = vmatprep.subr.mxu0 0.0
    %132 = vmatpush1.msra.mxu0 0.0
    %133 = vmatprep.subr.mxu0 0.0
    %134 = vmatpush1.msra.mxu0 0.0
    %135 = vmatprep.subr.mxu0 0.0
    %136 = vmatpush1.msra.mxu0 0.0
    %137 = vmatprep.subr.mxu0 0.0
    %138 = vmatpush1.msra.mxu0 0.0
    %139 = vmatprep.subr.mxu0 0.0
    %140 = vmatpush1.msra.mxu0 0.0
    %141 = vmatprep.subr.mxu0 0.0
    %142 = vmatpush1.msra.mxu0 0.0
    %143 = vmatprep.mubr.f32.mxu0 0.0
    %144 = vmatmul.mubr.f32.gmra.mrb[0].mxu0 %v57
    %v145 = vpop.f32.mrb[0].mxu0
    %v146 = vadd.f32 %v78, %v145
    %v147 = vpop.f32.mrb[0].mxu0
    %148 = vdwg.mxu0
    %v149 = vld [vmem:[#allocation7 + $0x1] sm:$0x1]
    %v150 = vld [vmem:[#allocation7 + $0x2] sm:$0x1]
    %v151 = vrot.slane %v146, 4
    %v152 = vadd.f32 %v146, %v151
    %v153 = vrot.slane %v152, 2
    %v154 = vadd.f32 %v152, %v153
    %v155 = vrot.slane %v154, 1
    %v156 = vadd.f32 %v154, %v155
    %v157 = vrcp.pop 8.0
    %v158 = vmul.f32 %v156, %v157
    %v159 = vsub.f32 %v146, %v158
    %v160 = vmul.f32 %v159, %v159
    %v161 = vrot.slane %v160, 4
    %v162 = vadd.f32 %v160, %v161
    %v163 = vrot.slane %v162, 2
    %v164 = vadd.f32 %v162, %v163
    %v165 = vrot.slane %v164, 1
    %v166 = vadd.f32 %v164, %v165
    %v167 = vmul.f32 %v166, %v157
    %v168 = vadd.f32 %v167, 1e-05
    %v169 = vrsqrt.pop %v168
    %v170 = vmul.f32 %v159, %v169
    %v171 = vlaneseq
    %v172 = vshrl.u32 %v171, 7
    %v173 = vsub.s32 0, %v172
    %v174 = vrot.slane %v149, %v173
    %v175 = vmul.f32 %v170, %v174
    %v176 = vlaneseq
    %v177 = vshrl.u32 %v176, 7
    %v178 = vsub.s32 0, %v177
    %v179 = vrot.slane %v150, %v178
    %v180 = vadd.f32 %v175, %v179
    %v181 = vmax.f32 %v180, 0.0
    %s182 = scalar_lea.vmem [#allocation5], 128
    %v183 = vld [vmem:[%s182] sm:$0xff]
    %v184 = vld [vmem:[%s182 + $0x8] sm:$0xff]
    %v185 = vld [vmem:[%s182 + $0x10] sm:$0xff]
    %v186 = vld [vmem:[%s182 + $0x18] sm:$0xff]
    %v187 = vld [vmem:[%s182 + $0x20] sm:$0xff]
    %v188 = vld [vmem:[%s182 + $0x28] sm:$0xff]
    %v189 = vld [vmem:[%s182 + $0x30] sm:$0xff]
    %v190 = vld [vmem:[%s182 + $0x38] sm:$0xff]
    %v191 = vld [vmem:[%s182 + $0x40] sm:$0xff]
    %v192 = vld [vmem:[%s182 + $0x48] sm:$0xff]
    %v193 = vld [vmem:[%s182 + $0x50] sm:$0xff]
    %v194 = vld [vmem:[%s182 + $0x58] sm:$0xff]
    %v195 = vld [vmem:[%s182 + $0x60] sm:$0xff]
    %v196 = vld [vmem:[%s182 + $0x68] sm:$0xff]
    %v197 = vld [vmem:[%s182 + $0x70] sm:$0xff]
    %v198 = vld [vmem:[%s182 + $0x78] sm:$0xff]
    %v199 = vld [vmem:[#allocation7 + $0x3] sm:$0x1]
    %v200 = vlaneseq
    %v201 = vshrl.u32 %v200, 7
    %v202 = vsub.s32 0, %v201
    %v203 = vrot.slane %v199, %v202
    %204 = vmatprep.subr.mxu0 0.0
    %205 = vmatpush1.msra.mxu0 %v183
    %206 = vmatprep.subr.mxu0 0.0
    %207 = vmatpush1.msra.mxu0 %v184
    %208 = vmatprep.subr.mxu0 0.0
    %209 = vmatpush1.msra.mxu0 %v185
    %210 = vmatprep.subr.mxu0 0.0
    %211 = vmatpush1.msra.mxu0 %v186
    %212 = vmatprep.subr.mxu0 0.0
    %213 = vmatpush1.msra.mxu0 %v187
    %214 = vmatprep.subr.mxu0 0.0
    %215 = vmatpush1.msra.mxu0 %v188
    %216 = vmatprep.subr.mxu0 0.0
    %217 = vmatpush1.msra.mxu0 %v189
    %218 = vmatprep.subr.mxu0 0.0
    %219 = vmatpush1.msra.mxu0 %v190
    %220 = vmatprep.subr.mxu0 0.0
    %221 = vmatpush1.msra.mxu0 %v191
    %222 = vmatprep.subr.mxu0 0.0
    %223 = vmatpush1.msra.mxu0 %v192
    %224 = vmatprep.subr.mxu0 0.0
    %225 = vmatpush1.msra.mxu0 %v193
    %226 = vmatprep.subr.mxu0 0.0
    %227 = vmatpush1.msra.mxu0 %v194
    %228 = vmatprep.subr.mxu0 0.0
    %229 = vmatpush1.msra.mxu0 %v195
    %230 = vmatprep.subr.mxu0 0.0
    %231 = vmatpush1.msra.mxu0 %v196
    %232 = vmatprep.subr.mxu0 0.0
    %233 = vmatpush1.msra.mxu0 %v197
    %234 = vmatprep.subr.mxu0 0.0
    %235 = vmatpush1.msra.mxu0 %v198
    %236 = vmatprep.subr.mxu0 0.0
    %237 = vmatpush1.msra.mxu0 0.0
    %238 = vmatprep.subr.mxu0 0.0
    %239 = vmatpush1.msra.mxu0 0.0
    %240 = vmatprep.subr.mxu0 0.0
    %241 = vmatpush1.msra.mxu0 0.0
    %242 = vmatprep.subr.mxu0 0.0
    %243 = vmatpush1.msra.mxu0 0.0
    %244 = vmatprep.subr.mxu0 0.0
    %245 = vmatpush1.msra.mxu0 0.0
    %246 = vmatprep.subr.mxu0 0.0
    %247 = vmatpush1.msra.mxu0 0.0
    %248 = vmatprep.subr.mxu0 0.0
    %249 = vmatpush1.msra.mxu0 0.0
    %250 = vmatprep.subr.mxu0 0.0
    %251 = vmatpush1.msra.mxu0 0.0
    %252 = vmatprep.subr.mxu0 0.0
    %253 = vmatpush1.msra.mxu0 0.0
    %254 = vmatprep.subr.mxu0 0.0
    %255 = vmatpush1.msra.mxu0 0.0
    %256 = vmatprep.subr.mxu0 0.0
    %257 = vmatpush1.msra.mxu0 0.0
    %258 = vmatprep.subr.mxu0 0.0
    %259 = vmatpush1.msra.mxu0 0.0
    %260 = vmatprep.subr.mxu0 0.0
    %261 = vmatpush1.msra.mxu0 0.0
    %262 = vmatprep.subr.mxu0 0.0
    %263 = vmatpush1.msra.mxu0 0.0
    %264 = vmatprep.subr.mxu0 0.0
    %265 = vmatpush1.msra.mxu0 0.0
    %266 = vmatprep.subr.mxu0 0.0
    %267 = vmatpush1.msra.mxu0 0.0
    %268 = vmatprep.mubr.f32.mxu0 0.0
    %269 = vmatmul.mubr.f32.gmra.mrb[0].mxu0 %v181
    %v270 = vpop.f32.mrb[0].mxu0
    %v271 = vadd.f32 %v203, %v270
    %v272 = vpop.f32.mrb[0].mxu0
    %273 = vdwg.mxu0
    %v274 = vlaneseq
    %v275 = vand.u32 %v274, 127
    %vm276 = vcmp.lt.s32.totalorder %v275, 16
    %v277 = vsel %vm276, %v271, -1e+30
    %278 = vmax.xlane.f32.xlu0 %v277
    %v279 = vpop.xlane.xlu0 %278
    %v280 = vsub.f32 %v277, %v279
    %v281 = vmul.f32 %v280, 1.442695
    %v282 = vpow.pop %v281
    %283 = vadd.xlane.f32.xlu0 %v282
    %v284 = vpop.xlane.xlu0 %283
    %v285 = vrcp.pop %v284
    %v286 = vmul.f32 %v282, %v285
    %287 = vst [vmem:[#allocation9] sm:$0xff] %v286
    %s288 = scalar_lea.vmem [#allocation5], 256
    %v289 = vld [vmem:[%s288] sm:$0xff]
    %v290 = vld [vmem:[%s288 + $0x8] sm:$0xff]
    %v291 = vld [vmem:[%s288 + $0x10] sm:$0xff]
    %v292 = vld [vmem:[%s288 + $0x18] sm:$0xff]
    %v293 = vld [vmem:[%s288 + $0x20] sm:$0xff]
    %v294 = vld [vmem:[%s288 + $0x28] sm:$0xff]
    %v295 = vld [vmem:[%s288 + $0x30] sm:$0xff]
    %v296 = vld [vmem:[%s288 + $0x38] sm:$0xff]
    %v297 = vld [vmem:[%s288 + $0x40] sm:$0xff]
    %v298 = vld [vmem:[%s288 + $0x48] sm:$0xff]
    %v299 = vld [vmem:[%s288 + $0x50] sm:$0xff]
    %v300 = vld [vmem:[%s288 + $0x58] sm:$0xff]
    %v301 = vld [vmem:[%s288 + $0x60] sm:$0xff]
    %v302 = vld [vmem:[%s288 + $0x68] sm:$0xff]
    %v303 = vld [vmem:[%s288 + $0x70] sm:$0xff]
    %v304 = vld [vmem:[%s288 + $0x78] sm:$0xff]
    %v305 = vld [vmem:[#allocation7 + $0x6] sm:$0x1]
    %v306 = vlaneseq
    %v307 = vshrl.u32 %v306, 7
    %v308 = vsub.s32 0, %v307
    %v309 = vrot.slane %v305, %v308
    %310 = vmatprep.subr.mxu0 0.0
    %311 = vmatpush1.msra.mxu0 %v289
    %312 = vmatprep.subr.mxu0 0.0
    %313 = vmatpush1.msra.mxu0 %v290
    %314 = vmatprep.subr.mxu0 0.0
    %315 = vmatpush1.msra.mxu0 %v291
    %316 = vmatprep.subr.mxu0 0.0
    %317 = vmatpush1.msra.mxu0 %v292
    %318 = vmatprep.subr.mxu0 0.0
    %319 = vmatpush1.msra.mxu0 %v293
    %320 = vmatprep.subr.mxu0 0.0
    %321 = vmatpush1.msra.mxu0 %v294
    %322 = vmatprep.subr.mxu0 0.0
    %323 = vmatpush1.msra.mxu0 %v295
    %324 = vmatprep.subr.mxu0 0.0
    %325 = vmatpush1.msra.mxu0 %v296
    %326 = vmatprep.subr.mxu0 0.0
    %327 = vmatpush1.msra.mxu0 %v297
    %328 = vmatprep.subr.mxu0 0.0
    %329 = vmatpush1.msra.mxu0 %v298
    %330 = vmatprep.subr.mxu0 0.0
    %331 = vmatpush1.msra.mxu0 %v299
    %332 = vmatprep.subr.mxu0 0.0
    %333 = vmatpush1.msra.mxu0 %v300
    %334 = vmatprep.subr.mxu0 0.0
    %335 = vmatpush1.msra.mxu0 %v301
    %336 = vmatprep.subr.mxu0 0.0
    %337 = vmatpush1.msra.mxu0 %v302
    %338 = vmatprep.subr.mxu0 0.0
    %339 = vmatpush1.msra.mxu0 %v303
    %340 = vmatprep.subr.mxu0 0.0
    %341 = vmatpush1.msra.mxu0 %v304
    %342 = vmatprep.subr.mxu0 0.0
    %343 = vmatpush1.msra.mxu0 0.0
    %344 = vmatprep.subr.mxu0 0.0
    %345 = vmatpush1.msra.mxu0 0.0
    %346 = vmatprep.subr.mxu0 0.0
    %347 = vmatpush1.msra.mxu0 0.0
    %348 = vmatprep.subr.mxu0 0.0
    %349 = vmatpush1.msra.mxu0 0.0
    %350 = vmatprep.subr.mxu0 0.0
    %351 = vmatpush1.msra.mxu0 0.0
    %352 = vmatprep.subr.mxu0 0.0
    %353 = vmatpush1.msra.mxu0 0.0
    %354 = vmatprep.subr.mxu0 0.0
    %355 = vmatpush1.msra.mxu0 0.0
    %356 = vmatprep.subr.mxu0 0.0
    %357 = vmatpush1.msra.mxu0 0.0
    %358 = vmatprep.subr.mxu0 0.0
    %359 = vmatpush1.msra.mxu0 0.0
    %360 = vmatprep.subr.mxu0 0.0
    %361 = vmatpush1.msra.mxu0 0.0
    %362 = vmatprep.subr.mxu0 0.0
    %363 = vmatpush1.msra.mxu0 0.0
    %364 = vmatprep.subr.mxu0 0.0
    %365 = vmatpush1.msra.mxu0 0.0
    %366 = vmatprep.subr.mxu0 0.0
    %367 = vmatpush1.msra.mxu0 0.0
    %368 = vmatprep.subr.mxu0 0.0
    %369 = vmatpush1.msra.mxu0 0.0
    %370 = vmatprep.subr.mxu0 0.0
    %371 = vmatpush1.msra.mxu0 0.0
    %372 = vmatprep.subr.mxu0 0.0
    %373 = vmatpush1.msra.mxu0 0.0
    %374 = vmatprep.mubr.f32.mxu0 0.0
    %375 = vmatmul.mubr.f32.gmra.mrb[0].mxu0 %v286
    %v376 = vpop.f32.mrb[0].mxu0
    %v377 = vadd.f32 %v309, %v376
    %v378 = vpop.f32.mrb[0].mxu0
    %379 = vdwg.mxu0
    %v380 = vld [vmem:[#allocation7 + $0x7] sm:$0x1]
    %v381 = vld [vmem:[#allocation7 + $0x8] sm:$0x1]
    %v382 = vrot.slane %v377, 4
    %v383 = vadd.f32 %v377, %v382
    %v384 = vrot.slane %v383, 2
    %v385 = vadd.f32 %v383, %v384
    %v386 = vrot.slane %v385, 1
    %v387 = vadd.f32 %v385, %v386
    %v388 = vmul.f32 %v387, %v157
    %v389 = vsub.f32 %v377, %v388
    %v390 = vmul.f32 %v389, %v389
    %v391 = vrot.slane %v390, 4
    %v392 = vadd.f32 %v390, %v391
    %v393 = vrot.slane %v392, 2
    %v394 = vadd.f32 %v392, %v393
    %v395 = vrot.slane %v394, 1
    %v396 = vadd.f32 %v394, %v395
    %v397 = vmul.f32 %v396, %v157
    %v398 = vadd.f32 %v397, 1e-05
    %v399 = vrsqrt.pop %v398
    %v400 = vmul.f32 %v389, %v399
    %v401 = vlaneseq
    %v402 = vshrl.u32 %v401, 7
    %v403 = vsub.s32 0, %v402
    %v404 = vrot.slane %v380, %v403
    %v405 = vmul.f32 %v400, %v404
    %v406 = vlaneseq
    %v407 = vshrl.u32 %v406, 7
    %v408 = vsub.s32 0, %v407
    %v409 = vrot.slane %v381, %v408
    %v410 = vadd.f32 %v405, %v409
    %v411 = vmax.f32 %v410, 0.0
    %s412 = scalar_lea.vmem [#allocation5], 384
    %v413 = vld [vmem:[%s412] sm:$0xff]
    %v414 = vld [vmem:[%s412 + $0x8] sm:$0xff]
    %v415 = vld [vmem:[%s412 + $0x10] sm:$0xff]
    %v416 = vld [vmem:[%s412 + $0x18] sm:$0xff]
    %v417 = vld [vmem:[%s412 + $0x20] sm:$0xff]
    %v418 = vld [vmem:[%s412 + $0x28] sm:$0xff]
    %v419 = vld [vmem:[%s412 + $0x30] sm:$0xff]
    %v420 = vld [vmem:[%s412 + $0x38] sm:$0xff]
    %v421 = vld [vmem:[%s412 + $0x40] sm:$0xff]
    %v422 = vld [vmem:[%s412 + $0x48] sm:$0xff]
    %v423 = vld [vmem:[%s412 + $0x50] sm:$0xff]
    %v424 = vld [vmem:[%s412 + $0x58] sm:$0xff]
    %v425 = vld [vmem:[%s412 + $0x60] sm:$0xff]
    %v426 = vld [vmem:[%s412 + $0x68] sm:$0xff]
    %v427 = vld [vmem:[%s412 + $0x70] sm:$0xff]
    %v428 = vld [vmem:[%s412 + $0x78] sm:$0xff]
    %v429 = vld [vmem:[#allocation7 + $0x9] sm:$0x1]
    %v430 = vlaneseq
    %v431 = vshrl.u32 %v430, 7
    %v432 = vsub.s32 0, %v431
    %v433 = vrot.slane %v429, %v432
    %434 = vmatprep.subr.mxu0 0.0
    %435 = vmatpush1.msra.mxu0 %v413
    %436 = vmatprep.subr.mxu0 0.0
    %437 = vmatpush1.msra.mxu0 %v414
    %438 = vmatprep.subr.mxu0 0.0
    %439 = vmatpush1.msra.mxu0 %v415
    %440 = vmatprep.subr.mxu0 0.0
    %441 = vmatpush1.msra.mxu0 %v416
    %442 = vmatprep.subr.mxu0 0.0
    %443 = vmatpush1.msra.mxu0 %v417
    %444 = vmatprep.subr.mxu0 0.0
    %445 = vmatpush1.msra.mxu0 %v418
    %446 = vmatprep.subr.mxu0 0.0
    %447 = vmatpush1.msra.mxu0 %v419
    %448 = vmatprep.subr.mxu0 0.0
    %449 = vmatpush1.msra.mxu0 %v420
    %450 = vmatprep.subr.mxu0 0.0
    %451 = vmatpush1.msra.mxu0 %v421
    %452 = vmatprep.subr.mxu0 0.0
    %453 = vmatpush1.msra.mxu0 %v422
    %454 = vmatprep.subr.mxu0 0.0
    %455 = vmatpush1.msra.mxu0 %v423
    %456 = vmatprep.subr.mxu0 0.0
    %457 = vmatpush1.msra.mxu0 %v424
    %458 = vmatprep.subr.mxu0 0.0
    %459 = vmatpush1.msra.mxu0 %v425
    %460 = vmatprep.subr.mxu0 0.0
    %461 = vmatpush1.msra.mxu0 %v426
    %462 = vmatprep.subr.mxu0 0.0
    %463 = vmatpush1.msra.mxu0 %v427
    %464 = vmatprep.subr.mxu0 0.0
    %465 = vmatpush1.msra.mxu0 %v428
    %466 = vmatprep.subr.mxu0 0.0
    %467 = vmatpush1.msra.mxu0 0.0
    %468 = vmatprep.subr.mxu0 0.0
    %469 = vmatpush1.msra.mxu0 0.0
    %470 = vmatprep.subr.mxu0 0.0
    %471 = vmatpush1.msra.mxu0 0.0
    %472 = vmatprep.subr.mxu0 0.0
    %473 = vmatpush1.msra.mxu0 0.0
    %474 = vmatprep.subr.mxu0 0.0
    %475 = vmatpush1.msra.mxu0 0.0
    %476 = vmatprep.subr.mxu0 0.0
    %477 = vmatpush1.msra.mxu0 0.0
    %478 = vmatprep.subr.mxu0 0.0
    %479 = vmatpush1.msra.mxu0 0.0
    %480 = vmatprep.subr.mxu0 0.0
    %481 = vmatpush1.msra.mxu0 0.0
    %482 = vmatprep.subr.mxu0 0.0
    %483 = vmatpush1.msra.mxu0 0.0
    %484 = vmatprep.subr.mxu0 0.0
    %485 = vmatpush1.msra.mxu0 0.0
    %486 = vmatprep.subr.mxu0 0.0
    %487 = vmatpush1.msra.mxu0 0.0
    %488 = vmatprep.subr.mxu0 0.0
    %489 = vmatpush1.msra.mxu0 0.0
    %490 = vmatprep.subr.mxu0 0.0
    %491 = vmatpush1.msra.mxu0 0.0
    %492 = vmatprep.subr.mxu0 0.0
    %493 = vmatpush1.msra.mxu0 0.0
    %494 = vmatprep.subr.mxu0 0.0
    %495 = vmatpush1.msra.mxu0 0.0
    %496 = vmatprep.subr.mxu0 0.0
    %497 = vmatpush1.msra.mxu0 0.0
    %498 = vmatprep.mubr.f32.mxu0 0.0
    %499 = vmatmul.mubr.f32.gmra.mrb[0].mxu0 %v411
    %v500 = vpop.f32.mrb[0].mxu0
    %v501 = vadd.f32 %v433, %v500
    %v502 = vpop.f32.mrb[0].mxu0
    %503 = vdwg.mxu0
    %v504 = vld [vmem:[#allocation7 + $0xa] sm:$0x1]
    %v505 = vld [vmem:[#allocation7 + $0xb] sm:$0x1]
    %v506 = vrot.slane %v501, 4
    %v507 = vadd.f32 %v501, %v506
    %v508 = vrot.slane %v507, 2
    %v509 = vadd.f32 %v507, %v508
    %v510 = vrot.slane %v509, 1
    %v511 = vadd.f32 %v509, %v510
    %v512 = vmul.f32 %v511, %v157
    %v513 = vsub.f32 %v501, %v512
    %v514 = vmul.f32 %v513, %v513
    %v515 = vrot.slane %v514, 4
    %v516 = vadd.f32 %v514, %v515
    %v517 = vrot.slane %v516, 2
    %v518 = vadd.f32 %v516, %v517
    %v519 = vrot.slane %v518, 1
    %v520 = vadd.f32 %v518, %v519
    %v521 = vmul.f32 %v520, %v157
    %v522 = vadd.f32 %v521, 1e-05
    %v523 = vrsqrt.pop %v522
    %v524 = vmul.f32 %v513, %v523
    %v525 = vlaneseq
    %v526 = vshrl.u32 %v525, 7
    %v527 = vsub.s32 0, %v526
    %v528 = vrot.slane %v504, %v527
    %v529 = vmul.f32 %v524, %v528
    %v530 = vlaneseq
    %v531 = vshrl.u32 %v530, 7
    %v532 = vsub.s32 0, %v531
    %v533 = vrot.slane %v505, %v532
    %v534 = vadd.f32 %v529, %v533
    %v535 = vmax.f32 %v534, 0.0
    %536 = vst [vmem:[#allocation8] sm:$0xff] %v535
    // Predicated region
    $region26: #{tpu_custom_call.1} parent=1 // pred_check
      _
    $region27: #{tpu_custom_call.1} parent=1 // pred_check_branch
      %538 = sbr.rel (0) target = $region29
    $region28: #{tpu_custom_call.1} parent=1 // pred_region
      %s540 = ssub.s32 128, 128
      %541 = vsyncadd [#allocation4], %s540
      %s543 = sshll.u32 [#allocation8], 4
      %s544 = int_to_ptr.vmem [resolvable:$true] %s543
      %546 = dma.vmem_to_hbm [thread:$0]  %s544, 128, %s3, [#allocation4]
    $region29: #{tpu_custom_call.1} parent=1 // pred_fallthru
      _
    // Predicated region
    $region30: #{tpu_custom_call.1} parent=1 // pred_check
      _
    $region31: #{tpu_custom_call.1} parent=1 // pred_check_branch
      %548 = sbr.rel (0) target = $region33
    $region32: #{tpu_custom_call.1} parent=1 // pred_region
      %s550 = ssub.s32 128, 128
      %551 = vsyncadd [#allocation10], %s550
      %s553 = sshll.u32 [#allocation9], 4
      %s554 = int_to_ptr.vmem [resolvable:$true] %s553
      %556 = dma.vmem_to_hbm [thread:$0]  %s554, 128, %s4, [#allocation10]
    $region33: #{tpu_custom_call.1} parent=1 // pred_fallthru
      _
    // Predicated region
    $region34: #{tpu_custom_call.1} parent=1 // pred_check
      _
    $region35: #{tpu_custom_call.1} parent=1 // pred_check_branch
      %558 = sbr.rel (0) target = $region37
    $region36: #{tpu_custom_call.1} parent=1 // pred_region
      %559 = dma.done [#allocation4], 128
    $region37: #{tpu_custom_call.1} parent=1 // pred_fallthru
      _
    // Predicated region
    $region38: #{tpu_custom_call.1} parent=1 // pred_check
      _
    $region39: #{tpu_custom_call.1} parent=1 // pred_check_branch
      %561 = sbr.rel (0) target = $region41
    $region40: #{tpu_custom_call.1} parent=1 // pred_region
      %562 = dma.done [#allocation10], 128
    $region41: #{tpu_custom_call.1} parent=1 // pred_fallthru
      _
    %563 = vsyncpa [#allocation3], 1
    %564 = vsyncpa [#allocation6], 1
    %565 = vsyncpa [#allocation4], 1
    %566 = vsyncpa [#allocation10], 1

</llo_original>
